<compile_context>
chip_gen: v5e
topology: v5e:2x2
jax: 0.10.0
libtpu: 0.0.40
codegen_flags: <defaults>
</compile_context>

<pallas_src>
import jax
import jax.numpy as jnp
from jax.experimental import pallas as pl
from jax.experimental.pallas import tpu as pltpu


def _copy_kernel(x_ref, o_ref):
    # Identity move of the current tile (or the whole array in the small case).
    o_ref[...] = x_ref[...]


# Arrays at or below this size are copied as a single whole-array block.
_SINGLE_BLOCK_BYTES = 2 * 1024 * 1024  # 2 MiB -> <= ~4 MiB VMEM for in + out


def _pick_tile(extent, target, quantum):
    """Largest tile <= target that is either the full extent or a multiple of quantum."""
    if extent <= target:
        return extent  # full-extent block: no (8,128) divisibility constraint
    return max(quantum, (target // quantum) * quantum)


def unflatten(x, C, H, W):
    """Pallas implementation of Unflatten.forward.

    Args:
      x: (N, C*H*W) array (row-major / contiguous).
    Returns:
      (N, C, H, W) array with the same element order as torch .view().
    """
    N, D = x.shape
    assert D == C * H * W, f"expected last dim {C*H*W}, got {D}"

    # TODO(synk): if no downstream fusion is needed, return x.reshape(N, C, H, W)
    # directly — the reshape is metadata-only and the copy kernel is pure overhead.

    itemsize = jnp.dtype(x.dtype).itemsize
    total_bytes = N * D * itemsize

    if total_bytes <= _SINGLE_BLOCK_BYTES:
        # Single grid step, whole array as one VMEM block.
        flat = pl.pallas_call(
            _copy_kernel,
            out_shape=jax.ShapeDtypeStruct((N, D), x.dtype),
        )(x)
    else:
        # Large arrays: lane-dense 2-D tiling.  Aim for ~2 MiB tiles (scaled by
        # dtype width); double-buffered in + out => ~8 MiB VMEM, safely inside
        # the default 32 MiB scoped limit and v7x's 64 MiB physical VMEM.
        target_elems = (2 * 1024 * 1024) // itemsize  # elems per ~2 MiB tile
        TN = _pick_tile(D, min(2048, max(128, target_elems // 512)), 128)
        TM = _pick_tile(N, max(8, target_elems // max(TN, 1)), 8)
        flat = pl.pallas_call(
            _copy_kernel,
            out_shape=jax.ShapeDtypeStruct((N, D), x.dtype),
            grid=(pl.cdiv(N, TM), pl.cdiv(D, TN)),
            in_specs=[pl.BlockSpec((TM, TN), lambda i, j: (i, j))],
            out_specs=pl.BlockSpec((TM, TN), lambda i, j: (i, j)),
            compiler_params=pltpu.CompilerParams(
                dimension_semantics=("parallel", "parallel"),
                vmem_limit_bytes=32 * 1024 * 1024,
            ),
        )(x)

    # Metadata-only reshape (glue), matches torch .view on contiguous input.
    return flat.reshape(N, C, H, W)


if __name__ == "__main__":
    # Small shapes consistent with the module: N=2, C=4, H=7, W=7.
    N, C, H, W = 2, 4, 7, 7
    key = jax.random.PRNGKey(0)
    x = jax.random.normal(key, (N, C * H * W), dtype=jnp.float32)

    out = unflatten(x, C, H, W)
    out = jax.block_until_ready(out)

    # Reference: pure-JAX reshape (identical semantics to torch .view()).
    ref = x.reshape(N, C, H, W)
    assert out.shape == (N, C, H, W), out.shape
    assert out.dtype == x.dtype
    assert jnp.array_equal(out, ref)

    # Exercise the tiled (large-array) path as well, with non-multiple extents
    # to check boundary (partial-block) handling.
    N2, C2, H2, W2 = 520, 128, 9, 9  # 520 x 10368 f32 ≈ 21.6 MiB
    x2 = jax.random.normal(jax.random.PRNGKey(1), (N2, C2 * H2 * W2), dtype=jnp.float32)
    out2 = jax.block_until_ready(unflatten(x2, C2, H2, W2))
    assert jnp.array_equal(out2, x2.reshape(N2, C2, H2, W2))

    print("KERNEL_OK")
</pallas_src>

<mosaic_0001>
module attributes {stable_mosaic.version = 11 : i64} {
  func.func @_copy_kernel(%arg0: memref<2x196xf32, #tpu.memory_space<vmem>>, %arg1: memref<2x196xf32, #tpu.memory_space<vmem>>) attributes {dimension_semantics = [], scalar_prefetch = 0 : i64, scratch_operands = 0 : i64, tpu.core_type = #tpu.core_type<tc>} {
    %c0 = arith.constant 0 : index
    %c0_0 = arith.constant 0 : index
    %0 = vector.load %arg0[%c0, %c0_0] : memref<2x196xf32, #tpu.memory_space<vmem>>, vector<2x196xf32>
    %c0_1 = arith.constant 0 : index
    %c0_2 = arith.constant 0 : index
    %1 = vector.load %arg1[%c0_1, %c0_2] : memref<2x196xf32, #tpu.memory_space<vmem>>, vector<2x196xf32>
    tpu.vector_store %arg1[%c0_1, %c0_2], %0 {strides = array<i32>} : memref<2x196xf32, #tpu.memory_space<vmem>>, vector<2x196xf32>,
    return
  }
}

</mosaic_0001>

<llo_original>
// kernel: tpu_custom_call.1
$region0: #{tpu_custom_call.1}
  #allocation0 [shape = 'u32[]', space=smem, size = 0x4, offset = 0x4, fixed_abs, tag = 'smem constant byte address 0x4 - core index']
  #allocation1 [shape = 'u32[72,128]{1,0:T(1,128)}', space=vmem, size = 0x9000, scoped, tag = 'internal scratch']
  %s0 = inlined_call_operand.hbm [shape: f32[2,196], index: 0, kind: input, shape index: {}]
  %s1 = inlined_call_operand.hbm [shape: f32[2,196], index: 1, kind: output, shape index: {}]
  %s2 = sld [smem:[#allocation0]]
  $region18: #{tpu_custom_call.1} parent=0
    _
  %s4 = ssub.s32 1, %s2
  %s5 = scalar_select 0, %s4, %s2
  $region1: #{tpu_custom_call.1} parent=0
    #allocation2 [shape = 'u8[2048]{0}', space=vmem, size = 0x800, scoped, tag = 'input window, operand 0, single buffered']
    #allocation3 [shape = 's32[1]{0}', space=sflag, size = 0x4, scoped, tag = 'scoped memory for tpu_custom_call.1']
    #allocation4 [shape = 's32[1]{0}', space=sflag, size = 0x4, scoped, tag = 'scoped memory for tpu_custom_call.1']
    #allocation5 [shape = 'u8[2048]{0}', space=vmem, size = 0x800, scoped, tag = 'output window, operand 0, single buffered']
    %6 = vsyncpa [#allocation3], 0
    %7 = vsyncpa [#allocation4], 0
    // Predicated region
    $region2: #{tpu_custom_call.1} parent=1 // pred_check
      _
    $region3: #{tpu_custom_call.1} parent=1 // pred_check_branch
      %9 = sbr.rel (0) target = $region5
    $region4: #{tpu_custom_call.1} parent=1 // pred_region
      %11 = vsyncadd [#allocation3], 0
      %s13 = sshll.u32 %s0, 4
      %s14 = int_to_ptr.hbm [resolvable:$true] %s13
      %s15 = sshll.u32 [#allocation2], 4
      %s16 = int_to_ptr.vmem [resolvable:$true] %s15
      %18 = dma.hbm_to_vmem [thread:$0]  %s14, 64, %s16, [#allocation3]
    $region5: #{tpu_custom_call.1} parent=1 // pred_fallthru
      _
    // Predicated region
    $region6: #{tpu_custom_call.1} parent=1 // pred_check
      _
    $region7: #{tpu_custom_call.1} parent=1 // pred_check_branch
      %20 = sbr.rel (0) target = $region9
    $region8: #{tpu_custom_call.1} parent=1 // pred_region
      %22 = dma.done [#allocation3], 64
    $region9: #{tpu_custom_call.1} parent=1 // pred_fallthru
      _
    %v23 = vld [vmem:[#allocation2] sm:$0xf]
    %vm24 = vcmask 1041408
    %vm25 = vcmask 551938
    %vm26 = vmor %vm25, %vm24
    %27 = vst.msk [vmem:[#allocation5] sm:$0xf] %vm26, %v23
    // Predicated region
    $region10: #{tpu_custom_call.1} parent=1 // pred_check
      _
    $region11: #{tpu_custom_call.1} parent=1 // pred_check_branch
      %29 = sbr.rel (0) target = $region13
    $region12: #{tpu_custom_call.1} parent=1 // pred_region
      %31 = vsyncadd [#allocation4], 0
      %s33 = sshll.u32 [#allocation5], 4
      %s34 = int_to_ptr.vmem [resolvable:$true] %s33
      %s35 = sshll.u32 %s1, 4
      %s36 = int_to_ptr.hbm [resolvable:$true] %s35
      %38 = dma.vmem_to_hbm [thread:$0]  %s34, 64, %s36, [#allocation4]
    $region13: #{tpu_custom_call.1} parent=1 // pred_fallthru
      _
    // Predicated region
    $region14: #{tpu_custom_call.1} parent=1 // pred_check
      _
    $region15: #{tpu_custom_call.1} parent=1 // pred_check_branch
      %40 = sbr.rel (0) target = $region17
    $region16: #{tpu_custom_call.1} parent=1 // pred_region
      %42 = dma.done [#allocation4], 64
    $region17: #{tpu_custom_call.1} parent=1 // pred_fallthru
      _
    %43 = vsyncpa [#allocation3], 1
    %44 = vsyncpa [#allocation4], 1

</llo_original>
